<compile_context>
chip_gen: v6e
topology: v6e:2x2x1
jax: 0.10.0
libtpu: 0.0.40
codegen_flags: <defaults>
</compile_context>

<pallas_src>
import jax
import jax.numpy as jnp
from jax import lax
from jax.experimental import pallas as pl
from jax.experimental.pallas import tpu as pltpu


def _round_up(n, m):
    return ((n + m - 1) // m) * m


# ---------------------------------------------------------------------------
# Single-step kernel (one GRUCell.forward call).
# ---------------------------------------------------------------------------
def gru_cell_kernel(x_ref, h_ref, wux_ref, wuh_ref, out_ref):
    h32 = h_ref[...].astype(jnp.float32)
    xb = x_ref[...].astype(wux_ref.dtype)      # bf16 MXU operands
    hb = h32.astype(wuh_ref.dtype)

    # u = sigmoid(update_gate([x, h])) -- cat folded into two split matmuls.
    u = jax.nn.sigmoid(
        jnp.dot(xb, wux_ref[...], preferred_element_type=jnp.float32)
        + jnp.dot(hb, wuh_ref[...], preferred_element_type=jnp.float32))

    # new_h = (1 - u) * h + u * tanh(h)  ==  h + u * (tanh(h) - h)
    out_ref[...] = (h32 + u * (jnp.tanh(h32) - h32)).astype(out_ref.dtype)


def gru_cell_forward(x, h, params, *, bm=None):
    """One GRUCell.forward step. Returns (new_h, new_h)."""
    B, I = x.shape
    H = h.shape[1]
    H_pad = _round_up(H, 128)                  # lane-dense output stores

    # Batch tile heuristic: sublane-aligned, >=2 grid steps for mid batches
    # (keeps both v7x TensorCores busy), 256-row tiles for big batches
    # (fills the v6e/v7x 256x256 MXU; pass bm=128 explicitly on v5e).
    if bm is None:
        if B <= 8:
            bm = 8
        elif B <= 512:
            bm = _round_up(pl.cdiv(B, 2), 8)
        else:
            bm = 256
    bm = max(8, _round_up(bm, 8))
    B_pad = _round_up(B, bm)                   # padded last tile, never bm=B fallback
    grid = (B_pad // bm,)

    xp = jnp.pad(x, ((0, B_pad - B), (0, 0)))
    hp = jnp.pad(h, ((0, B_pad - B), (0, H_pad - H)))
    wxp = jnp.pad(params["wu_x"], ((0, 0), (0, H_pad - H)))
    whp = jnp.pad(params["wu_h"], ((0, H_pad - H), (0, H_pad - H)))

    out = pl.pallas_call(
        gru_cell_kernel,
        out_shape=jax.ShapeDtypeStruct((B_pad, H_pad), h.dtype),
        grid=grid,
        in_specs=[
            pl.BlockSpec((bm, I), lambda i: (i, 0)),          # x tile
            pl.BlockSpec((bm, H_pad), lambda i: (i, 0)),      # h tile
            pl.BlockSpec((I, H_pad), lambda i: (0, 0)),       # wu_x (resident)
            pl.BlockSpec((H_pad, H_pad), lambda i: (0, 0)),   # wu_h (resident)
        ],
        out_specs=pl.BlockSpec((bm, H_pad), lambda i: (i, 0)),
        compiler_params=pltpu.CompilerParams(
            dimension_semantics=("parallel",)),               # shard batch over TCs
    )(xp, hp, wxp, whp)

    new_h = out[:B, :H]
    return new_h, new_h


# ---------------------------------------------------------------------------
# Sequence kernel: TT timesteps per grid iteration, hidden state carried in
# a VMEM scratch, wu_h resident in VMEM for the whole recurrence.  The input
# projection is hoisted to one big GEMM in the wrapper and streamed in as a
# lane-dense (TT, B, H) slab.
# ---------------------------------------------------------------------------
def gru_seq_kernel(a_ref, h0_ref, wuh_ref, out_ref, h_scr):
    @pl.when(pl.program_id(0) == 0)
    def _():
        h_scr[...] = h0_ref[...].astype(jnp.float32)

    tt = a_ref.shape[0]

    def step(s, h):
        th = jnp.tanh(h)                       # EUP; off the serial h->u->h path
        logits = a_ref[s] + jnp.dot(
            h.astype(wuh_ref.dtype), wuh_ref[...],
            preferred_element_type=jnp.float32)
        u = jax.nn.sigmoid(logits)
        new_h = h + u * (th - h)
        # out_ref IS the (TT, B, H) VMEM slab for this grid step; Pallas
        # writes it back to HBM once per grid iteration (lane-dense vst).
        out_ref[s] = new_h.astype(out_ref.dtype)
        return new_h

    h_scr[...] = lax.fori_loop(0, tt, step, h_scr[...], unroll=True)


def gru_sequence_forward(xs, h0, params, *, tt=8):
    """Runs the GRUCell over a [T, B, I] sequence. Returns (all_h, last_h)."""
    T, B, I = xs.shape
    H = h0.shape[1]
    tt = max(1, min(tt, T))
    T_pad = _round_up(T, tt)
    B_pad = _round_up(B, 8)
    H_pad = _round_up(H, 128)

    wu_x = params["wu_x"]                                     # (I, H) bf16
    wu_h = jnp.pad(params["wu_h"], ((0, H_pad - H), (0, H_pad - H)))

    # Hoisted input projection: one large GEMM at full MXU utilization instead
    # of T tiny MXU-starved matmuls inside the serial recurrence.
    a = jnp.dot(xs.reshape(T * B, I).astype(wu_x.dtype), wu_x,
                preferred_element_type=jnp.float32).reshape(T, B, H)
    a = jnp.pad(a, ((0, T_pad - T), (0, B_pad - B), (0, H_pad - H)))
    h0p = jnp.pad(h0, ((0, B_pad - B), (0, H_pad - H)))

    hs = pl.pallas_call(
        gru_seq_kernel,
        out_shape=jax.ShapeDtypeStruct((T_pad, B_pad, H_pad), h0.dtype),
        grid=(T_pad // tt,),
        in_specs=[
            pl.BlockSpec((tt, B_pad, H_pad), lambda i: (i, 0, 0)),  # A slab
            pl.BlockSpec((B_pad, H_pad), lambda i: (0, 0)),         # h0
            pl.BlockSpec((H_pad, H_pad), lambda i: (0, 0)),         # wu_h resident
        ],
        out_specs=pl.BlockSpec((tt, B_pad, H_pad), lambda i: (i, 0, 0)),
        scratch_shapes=[pltpu.VMEM((B_pad, H_pad), jnp.float32)],   # hidden carry
        compiler_params=pltpu.CompilerParams(
            dimension_semantics=("arbitrary",)),                    # sequential in T
    )(a, h0p, wu_h)

    hs = hs[:T, :B, :H]
    return hs, hs[-1]


# ---------------------------------------------------------------------------
# Parameter init (matches reset_parameters('uniform'): U(-0.08, 0.08)).
# Weights stored transposed, split at the [x, h] concat boundary, in bf16.
# ---------------------------------------------------------------------------
def init_params(key, input_size, output_size, dtype=jnp.bfloat16):
    ks = jax.random.split(key, 4)

    def u(k, shape):
        return jax.random.uniform(k, shape, jnp.float32,
                                  minval=-0.08, maxval=0.08).astype(dtype)

    wr = u(ks[0], (input_size + output_size, output_size))
    wu = u(ks[1], (input_size + output_size, output_size))
    wt = u(ks[2], (input_size + output_size, output_size))
    bt = u(ks[3], (1, output_size))
    return {
        "wr_x": wr[:input_size], "wr_h": wr[input_size:],
        "wu_x": wu[:input_size], "wu_h": wu[input_size:],
        "wt_x": wt[:input_size], "wt_h": wt[input_size:],
        "bt": bt,
    }


# ---------------------------------------------------------------------------
# Pure-JAX references (precision-matched: bf16 matmul operands, f32 accum),
# mirroring the torch forward's dataflow exactly.
# ---------------------------------------------------------------------------
def gru_cell_reference(x, h, params):
    xb = x.astype(jnp.bfloat16)
    hb = h.astype(jnp.bfloat16)
    # r and c are computed by the torch module but never used in its output.
    r = jax.nn.sigmoid(
        jnp.dot(xb, params["wr_x"], preferred_element_type=jnp.float32)
        + jnp.dot(hb, params["wr_h"], preferred_element_type=jnp.float32))
    c = (jnp.dot(xb, params["wt_x"], preferred_element_type=jnp.float32)
         + jnp.dot((r * h).astype(jnp.bfloat16), params["wt_h"],
                   preferred_element_type=jnp.float32)
         + params["bt"].astype(jnp.float32))
    del r, c
    u = jax.nn.sigmoid(
        jnp.dot(xb, params["wu_x"], preferred_element_type=jnp.float32)
        + jnp.dot(hb, params["wu_h"], preferred_element_type=jnp.float32))
    new_h = (1.0 - u) * h + u * jnp.tanh(h)
    return new_h, new_h


def gru_sequence_reference(xs, h0, params):
    def step(h, x):
        new_h, _ = gru_cell_reference(x, h, params)
        return new_h, new_h

    h_last, hs = lax.scan(step, h0, xs)
    return hs, h_last


if __name__ == "__main__":
    # Small, lane/sublane-dense demo shapes: B=8 (sublane), H=128 (lane),
    # I=32, T=16 with TT=8 timesteps per grid step (grid of 2).
    input_size, output_size, batch, seq = 32, 128, 8, 16
    key = jax.random.PRNGKey(0)
    k_params, k_x, k_h, k_xs = jax.random.split(key, 4)

    params = init_params(k_params, input_size, output_size)
    x = jax.random.normal(k_x, (batch, input_size), jnp.float32)
    h = jax.random.normal(k_h, (batch, output_size), jnp.float32)

    # Tolerances: bf16 weights are shared by kernel and reference; remaining
    # differences are f32 accumulation-order effects (MXU vs XLA GEMM), so
    # 1e-4 is a deliberate, tight bound -- not a silent loosening.
    ATOL = RTOL = 1e-4

    # Single step.
    new_h, state = gru_cell_forward(x, h, params)
    jax.block_until_ready(new_h)
    ref_h, _ = gru_cell_reference(x, h, params)
    assert new_h.shape == (batch, output_size)
    assert jnp.allclose(new_h, ref_h, atol=ATOL, rtol=RTOL), "cell mismatch"

    # Full sequence (init_state -> zeros), weights resident across the scan.
    xs = jax.random.normal(k_xs, (seq, batch, input_size), jnp.float32)
    h0 = jnp.zeros((batch, output_size), jnp.float32)
    hs, h_last = gru_sequence_forward(xs, h0, params, tt=8)
    jax.block_until_ready(hs)
    ref_hs, ref_last = gru_sequence_reference(xs, h0, params)
    assert hs.shape == (seq, batch, output_size)
    assert jnp.allclose(hs, ref_hs, atol=ATOL, rtol=RTOL), "sequence mismatch"
    assert jnp.allclose(h_last, ref_last, atol=ATOL, rtol=RTOL), "last-h mismatch"

    print("KERNEL_OK")
</pallas_src>

<mosaic_0001>
module attributes {stable_mosaic.version = 11 : i64} {
  func.func @gru_cell_kernel(%arg0: i32, %arg1: memref<8x32xf32, #tpu.memory_space<vmem>>, %arg2: memref<8x128xf32, #tpu.memory_space<vmem>>, %arg3: memref<32x128xbf16, #tpu.memory_space<vmem>>, %arg4: memref<128x128xbf16, #tpu.memory_space<vmem>>, %arg5: memref<8x128xf32, #tpu.memory_space<vmem>>) attributes {dimension_semantics = [#tpu.dimension_semantics<parallel>], iteration_bounds = array<i64: 1>, scalar_prefetch = 0 : i64, scratch_operands = 0 : i64, tpu.core_type = #tpu.core_type<tc>, window_params = [{transform_indices = @transform_0, window_bounds = array<i64: 8, 32>}, {transform_indices = @transform_1, window_bounds = array<i64: 8, 128>}, {pipeline_mode = #tpu.pipeline_mode<synchronous>, transform_indices = @transform_2, window_bounds = array<i64: 32, 128>}, {pipeline_mode = #tpu.pipeline_mode<synchronous>, transform_indices = @transform_3, window_bounds = array<i64: 128, 128>}, {transform_indices = @transform_4, window_bounds = array<i64: 8, 128>}]} {
    %c0 = arith.constant 0 : index
    %c0_0 = arith.constant 0 : index
    %0 = vector.load %arg2[%c0, %c0_0] : memref<8x128xf32, #tpu.memory_space<vmem>>, vector<8x128xf32>
    %c0_1 = arith.constant 0 : index
    %c0_2 = arith.constant 0 : index
    %1 = vector.load %arg1[%c0_1, %c0_2] : memref<8x32xf32, #tpu.memory_space<vmem>>, vector<8x32xf32>
    %2 = arith.truncf %1 : vector<8x32xf32> to vector<8x32xbf16>
    %3 = arith.truncf %0 : vector<8x128xf32> to vector<8x128xbf16>
    %c0_3 = arith.constant 0 : index
    %c0_4 = arith.constant 0 : index
    %4 = vector.load %arg3[%c0_3, %c0_4] : memref<32x128xbf16, #tpu.memory_space<vmem>>, vector<32x128xbf16>
    %cst = arith.constant dense<0.000000e+00> : vector<8x128xf32>
    %5 = tpu.matmul %2, %4, %cst {dimension_numbers = #tpu.dot_dimension_numbers<[1], [0], [0], [1], [0, 0, 1, 1], [], []>} : vector<8x32xbf16>, vector<32x128xbf16>, vector<8x128xf32> -> vector<8x128xf32>
    %c0_5 = arith.constant 0 : index
    %c0_6 = arith.constant 0 : index
    %6 = vector.load %arg4[%c0_5, %c0_6] : memref<128x128xbf16, #tpu.memory_space<vmem>>, vector<128x128xbf16>
    %cst_7 = arith.constant dense<0.000000e+00> : vector<8x128xf32>
    %7 = tpu.matmul %3, %6, %cst_7 {dimension_numbers = #tpu.dot_dimension_numbers<[1], [0], [0], [1], [0, 0, 1, 1], [], []>} : vector<8x128xbf16>, vector<128x128xbf16>, vector<8x128xf32> -> vector<8x128xf32>
    %8 = arith.addf %5, %7 : vector<8x128xf32>
    %9 = arith.negf %8 : vector<8x128xf32>
    %10 = math.exp %9 : vector<8x128xf32>
    %cst_8 = arith.constant 1.000000e+00 : f32
    %11 = vector.broadcast %cst_8 : f32 to vector<8x128xf32>
    %12 = arith.addf %11, %10 : vector<8x128xf32>
    %13 = arith.divf %11, %12 : vector<8x128xf32>
    %14 = math.tanh %0 : vector<8x128xf32>
    %15 = arith.subf %14, %0 : vector<8x128xf32>
    %16 = arith.mulf %13, %15 : vector<8x128xf32>
    %17 = arith.addf %0, %16 : vector<8x128xf32>
    %c0_9 = arith.constant 0 : index
    %c0_10 = arith.constant 0 : index
    %18 = vector.load %arg5[%c0_9, %c0_10] : memref<8x128xf32, #tpu.memory_space<vmem>>, vector<8x128xf32>
    tpu.vector_store %arg5[%c0_9, %c0_10], %17 {strides = array<i32>} : memref<8x128xf32, #tpu.memory_space<vmem>>, vector<8x128xf32>,
    return
  }
  func.func @transform_0(%arg0: i32) -> (i32, i32) {
    %c0_i32 = arith.constant 0 : i32
    %c0_i32_0 = arith.constant 0 : i32
    return %arg0, %c0_i32 : i32, i32
  }
  func.func @transform_1(%arg0: i32) -> (i32, i32) {
    %c0_i32 = arith.constant 0 : i32
    %c0_i32_0 = arith.constant 0 : i32
    return %arg0, %c0_i32 : i32, i32
  }
  func.func @transform_2(%arg0: i32) -> (i32, i32) {
    %c0_i32 = arith.constant 0 : i32
    %c0_i32_0 = arith.constant 0 : i32
    %c0_i32_1 = arith.constant 0 : i32
    return %c0_i32, %c0_i32_0 : i32, i32
  }
  func.func @transform_3(%arg0: i32) -> (i32, i32) {
    %c0_i32 = arith.constant 0 : i32
    %c0_i32_0 = arith.constant 0 : i32
    %c0_i32_1 = arith.constant 0 : i32
    return %c0_i32, %c0_i32_0 : i32, i32
  }
  func.func @transform_4(%arg0: i32) -> (i32, i32) {
    %c0_i32 = arith.constant 0 : i32
    %c0_i32_0 = arith.constant 0 : i32
    return %arg0, %c0_i32 : i32, i32
  }
}

</mosaic_0001>

<llo_original>
// kernel: tpu_custom_call.1
$region0: #{tpu_custom_call.1}
  #allocation0 [shape = 'u32[]', space=smem, size = 0x4, offset = 0x4, fixed_abs, tag = 'smem constant byte address 0x4 - core index']
  #allocation1 [shape = 'u32[144,128]{1,0:T(1,128)}', space=vmem, size = 0x12000, scoped, tag = 'internal scratch']
  %s0 = inlined_call_operand.hbm [shape: f32[8,32], index: 0, kind: input, shape index: {}]
  %s1 = inlined_call_operand.hbm [shape: f32[8,128], index: 1, kind: input, shape index: {}]
  %s2 = inlined_call_operand.hbm [shape: bf16[32,128], index: 2, kind: input, shape index: {}]
  %s3 = inlined_call_operand.hbm [shape: bf16[128,128], index: 3, kind: input, shape index: {}]
  %s4 = inlined_call_operand.hbm [shape: f32[8,128], index: 4, kind: output, shape index: {}]
  %s5 = sld [smem:[#allocation0]]
  $region42: #{tpu_custom_call.1} parent=0
    _
  %s7 = ssub.s32 1, %s5
  %s8 = scalar_select 0, %s7, %s5
  $region1: #{tpu_custom_call.1} parent=0
    #allocation2 [shape = 'u8[4096]{0}', space=vmem, size = 0x1000, scoped, tag = 'input window, operand 0, single buffered']
    #allocation3 [shape = 's32[1]{0}', space=sflag, size = 0x4, scoped, tag = 'scoped memory for tpu_custom_call.1']
    #allocation4 [shape = 's32[1]{0}', space=sflag, size = 0x4, scoped, tag = 'scoped memory for tpu_custom_call.1']
    #allocation5 [shape = 'u8[4096]{0}', space=vmem, size = 0x1000, scoped, tag = 'input window, operand 1, single buffered']
    #allocation6 [shape = 's32[1]{0}', space=sflag, size = 0x4, scoped, tag = 'scoped memory for tpu_custom_call.1']
    #allocation7 [shape = 'u8[8192]{0}', space=vmem, size = 0x2000, scoped, tag = 'input window, operand 2, single buffered']
    #allocation8 [shape = 'u8[32768]{0}', space=vmem, size = 0x8000, scoped, tag = 'input window, operand 3, single buffered']
    #allocation9 [shape = 's32[1]{0}', space=sflag, size = 0x4, scoped, tag = 'scoped memory for tpu_custom_call.1']
    #allocation10 [shape = 'u8[4096]{0}', space=vmem, size = 0x1000, scoped, tag = 'output window, operand 0, single buffered']
    %9 = vsyncpa [#allocation3], 0
    %10 = vsyncpa [#allocation6], 0
    %11 = vsyncpa [#allocation9], 0
    %12 = vsyncpa [#allocation4], 0
    // Predicated region
    $region2: #{tpu_custom_call.1} parent=1 // pred_check
      _
    $region3: #{tpu_custom_call.1} parent=1 // pred_check_branch
      %14 = sbr.rel (0) target = $region5
    $region4: #{tpu_custom_call.1} parent=1 // pred_region
      %s16 = ssub.s32 128, 128
      %17 = vsyncadd [#allocation3], %s16
      %s19 = sshll.u32 [#allocation2], 4
      %s20 = int_to_ptr.vmem [resolvable:$true] %s19
      %22 = dma.hbm_to_vmem [thread:$0]  %s0, 128, %s20, [#allocation3]
    $region5: #{tpu_custom_call.1} parent=1 // pred_fallthru
      _
    // Predicated region
    $region6: #{tpu_custom_call.1} parent=1 // pred_check
      _
    $region7: #{tpu_custom_call.1} parent=1 // pred_check_branch
      %24 = sbr.rel (0) target = $region9
    $region8: #{tpu_custom_call.1} parent=1 // pred_region
      %s26 = ssub.s32 128, 128
      %27 = vsyncadd [#allocation6], %s26
      %s29 = sshll.u32 [#allocation5], 4
      %s30 = int_to_ptr.vmem [resolvable:$true] %s29
      %32 = dma.hbm_to_vmem [thread:$0]  %s1, 128, %s30, [#allocation6]
    $region9: #{tpu_custom_call.1} parent=1 // pred_fallthru
      _
    // Predicated region
    $region10: #{tpu_custom_call.1} parent=1 // pred_check
      _
    $region11: #{tpu_custom_call.1} parent=1 // pred_check_branch
      %34 = sbr.rel (0) target = $region13
    $region12: #{tpu_custom_call.1} parent=1 // pred_region
      %s36 = ssub.s32 256, 256
      %37 = vsyncadd [#allocation6], %s36
      %s38 = sshll.u32 [#allocation7], 4
      %s39 = int_to_ptr.vmem [resolvable:$true] %s38
      %44 = dma.hbm_to_vmem [thread:$0]  %s2, 256, %s39, [#allocation6], 64, 64, 4
    $region13: #{tpu_custom_call.1} parent=1 // pred_fallthru
      _
    // Predicated region
    $region14: #{tpu_custom_call.1} parent=1 // pred_check
      _
    $region15: #{tpu_custom_call.1} parent=1 // pred_check_branch
      %46 = sbr.rel (0) target = $region17
    $region16: #{tpu_custom_call.1} parent=1 // pred_region
      %s48 = ssub.s32 1024, 1024
      %49 = vsyncadd [#allocation9], %s48
      %s50 = sshll.u32 [#allocation8], 4
      %s51 = int_to_ptr.vmem [resolvable:$true] %s50
      %56 = dma.hbm_to_vmem [thread:$0]  %s3, 1024, %s51, [#allocation9], 64, 64, 4
    $region17: #{tpu_custom_call.1} parent=1 // pred_fallthru
      _
    // Predicated region
    $region18: #{tpu_custom_call.1} parent=1 // pred_check
      _
    $region19: #{tpu_custom_call.1} parent=1 // pred_check_branch
      %58 = sbr.rel (0) target = $region21
    $region20: #{tpu_custom_call.1} parent=1 // pred_region
      %59 = dma.done [#allocation3], 128
    $region21: #{tpu_custom_call.1} parent=1 // pred_fallthru
      _
    // Predicated region
    $region22: #{tpu_custom_call.1} parent=1 // pred_check
      _
    $region23: #{tpu_custom_call.1} parent=1 // pred_check_branch
      %61 = sbr.rel (0) target = $region25
    $region24: #{tpu_custom_call.1} parent=1 // pred_region
      %62 = dma.done [#allocation6], 128
    $region25: #{tpu_custom_call.1} parent=1 // pred_fallthru
      _
    // Predicated region
    $region26: #{tpu_custom_call.1} parent=1 // pred_check
      _
    $region27: #{tpu_custom_call.1} parent=1 // pred_check_branch
      %64 = sbr.rel (0) target = $region29
    $region28: #{tpu_custom_call.1} parent=1 // pred_region
      %65 = dma.done [#allocation6], 256
    $region29: #{tpu_custom_call.1} parent=1 // pred_fallthru
      _
    // Predicated region
    $region30: #{tpu_custom_call.1} parent=1 // pred_check
      _
    $region31: #{tpu_custom_call.1} parent=1 // pred_check_branch
      %67 = sbr.rel (0) target = $region33
    $region32: #{tpu_custom_call.1} parent=1 // pred_region
      %68 = dma.done [#allocation9], 1024
    $region33: #{tpu_custom_call.1} parent=1 // pred_fallthru
      _
    %v70 = vld [vmem:[#allocation5] sm:$0xff]
    %v71 = vld [vmem:[#allocation2] sm:$0xff]
    %v72 = vpack.c.bf16 %v71, %v71
    %v73 = vpack.c.bf16 %v70, %v70
    %v74 = vld [vmem:[#allocation7] sm:$0xf]
    %v75 = vld [vmem:[#allocation7 + $0x4] sm:$0xf]
    %v76 = vld [vmem:[#allocation7 + $0x8] sm:$0xf]
    %v77 = vld [vmem:[#allocation7 + $0xc] sm:$0xf]
    %v78 = vld [vmem:[#allocation8] sm:$0xf]
    %v79 = vld [vmem:[#allocation8 + $0x4] sm:$0xf]
    %v80 = vld [vmem:[#allocation8 + $0x8] sm:$0xf]
    %v81 = vld [vmem:[#allocation8 + $0xc] sm:$0xf]
    %v82 = vld [vmem:[#allocation8 + $0x10] sm:$0xf]
    %v83 = vld [vmem:[#allocation8 + $0x14] sm:$0xf]
    %v84 = vld [vmem:[#allocation8 + $0x18] sm:$0xf]
    %v85 = vld [vmem:[#allocation8 + $0x1c] sm:$0xf]
    %v86 = vld [vmem:[#allocation8 + $0x20] sm:$0xf]
    %v87 = vld [vmem:[#allocation8 + $0x24] sm:$0xf]
    %v88 = vld [vmem:[#allocation8 + $0x28] sm:$0xf]
    %v89 = vld [vmem:[#allocation8 + $0x2c] sm:$0xf]
    %v90 = vld [vmem:[#allocation8 + $0x30] sm:$0xf]
    %v91 = vld [vmem:[#allocation8 + $0x34] sm:$0xf]
    %v92 = vld [vmem:[#allocation8 + $0x38] sm:$0xf]
    %v93 = vld [vmem:[#allocation8 + $0x3c] sm:$0xf]
    %v110 = vunpack.c.l.b16 %v78
    %v111 = vunpack.c.l.b16 %v79
    %v112 = vunpack.c.l.b16 %v80
    %v113 = vunpack.c.l.b16 %v81
    %v114 = vunpack.c.l.b16 %v82
    %v115 = vunpack.c.l.b16 %v83
    %v116 = vunpack.c.l.b16 %v84
    %v117 = vunpack.c.l.b16 %v85
    %v118 = vunpack.c.l.b16 %v86
    %v119 = vunpack.c.l.b16 %v87
    %v120 = vunpack.c.l.b16 %v88
    %v121 = vunpack.c.l.b16 %v89
    %v122 = vunpack.c.l.b16 %v90
    %v123 = vunpack.c.l.b16 %v91
    %v124 = vunpack.c.l.b16 %v92
    %v125 = vunpack.c.l.b16 %v93
    %v126 = vpack.c.b16 %v111, %v110
    %v127 = vpack.c.b16 %v113, %v112
    %v128 = vpack.c.b16 %v115, %v114
    %v129 = vpack.c.b16 %v117, %v116
    %v130 = vpack.c.b16 %v119, %v118
    %v131 = vpack.c.b16 %v121, %v120
    %v132 = vpack.c.b16 %v123, %v122
    %v133 = vpack.c.b16 %v125, %v124
    %142 = vmatprep.subr.bf16.mxu0 0
    %143 = vmatpush1.bf16.msra.mxu0 %v133
    %144 = vmatprep.subr.bf16.mxu0 0
    %145 = vmatpush1.bf16.msra.mxu0 %v132
    %146 = vmatprep.subr.bf16.mxu0 0
    %147 = vmatpush1.bf16.msra.mxu0 %v131
    %148 = vmatprep.subr.bf16.mxu0 0
    %149 = vmatpush1.bf16.msra.mxu0 %v130
    %150 = vmatprep.subr.bf16.mxu0 0
    %151 = vmatpush1.bf16.msra.mxu0 %v129
    %152 = vmatprep.subr.bf16.mxu0 0
    %153 = vmatpush1.bf16.msra.mxu0 %v128
    %154 = vmatprep.subr.bf16.mxu0 0
    %155 = vmatpush1.bf16.msra.mxu0 %v127
    %156 = vmatprep.subr.bf16.mxu0 0
    %157 = vmatpush1.bf16.msra.mxu0 %v126
    %158 = vmatprep.subr.bf16.mxu0 0
    %159 = vmatpush2.bf16.msra.mxu0 0
    %160 = vmatprep.subr.bf16.mxu0 0
    %161 = vmatpush2.bf16.msra.mxu0 0
    %162 = vmatprep.subr.bf16.mxu0 0
    %163 = vmatpush2.bf16.msra.mxu0 0
    %164 = vmatprep.subr.bf16.mxu0 0
    %165 = vmatpush2.bf16.msra.mxu0 0
    %166 = vmatprep.subr.bf16.mxu0 0
    %167 = vmatpush2.bf16.msra.mxu0 0
    %168 = vmatprep.subr.bf16.mxu0 0
    %169 = vmatpush2.bf16.msra.mxu0 0
    %170 = vmatprep.subr.bf16.mxu0 0
    %171 = vmatpush2.bf16.msra.mxu0 0
    %172 = vmatprep.subr.bf16.mxu0 0
    %173 = vmatpush2.bf16.msra.mxu0 0
    %174 = vmatprep.mubr.bf16.mxu0 0
    %175 = vmatmul.mubr.bf16.gmra.mxu0 %v73
    %v176 = vpop.f32.mrf.mxu0
    %v177 = vadd.f32 0.0, %v176
    %v178 = vpop.f32.mrf.mxu0
    %v179 = vpop.f32.mrf.mxu0
    %v180 = vpop.f32.mrf.mxu0
    %181 = vdwg.mxu0
    %v186 = vunpack.c.l.b16 %v74
    %v187 = vunpack.c.l.b16 %v75
    %v188 = vunpack.c.l.b16 %v76
    %v189 = vunpack.c.l.b16 %v77
    %v190 = vpack.c.b16 %v187, %v186
    %v191 = vpack.c.b16 %v189, %v188
    %vm194 = vcmask 261120
    %v196 = vsel %vm194, %v72, 0
    %198 = vmatprep.subr.bf16.mxu0 0
    %199 = vmatpush1.bf16.msra.mxu0 0
    %200 = vmatprep.subr.bf16.mxu0 0
    %201 = vmatpush1.bf16.msra.mxu0 0
    %202 = vmatprep.subr.bf16.mxu0 0
    %203 = vmatpush1.bf16.msra.mxu0 0
    %204 = vmatprep.subr.bf16.mxu0 0
    %205 = vmatpush1.bf16.msra.mxu0 0
    %206 = vmatprep.subr.bf16.mxu0 0
    %207 = vmatpush1.bf16.msra.mxu0 0
    %208 = vmatprep.subr.bf16.mxu0 0
    %209 = vmatpush1.bf16.msra.mxu0 0
    %210 = vmatprep.subr.bf16.mxu0 0
    %211 = vmatpush1.bf16.msra.mxu0 %v191
    %212 = vmatprep.subr.bf16.mxu0 0
    %213 = vmatpush1.bf16.msra.mxu0 %v190
    %214 = vmatprep.subr.bf16.mxu0 0
    %215 = vmatpush2.bf16.msra.mxu0 0
    %216 = vmatprep.subr.bf16.mxu0 0
    %217 = vmatpush2.bf16.msra.mxu0 0
    %218 = vmatprep.subr.bf16.mxu0 0
    %219 = vmatpush2.bf16.msra.mxu0 0
    %220 = vmatprep.subr.bf16.mxu0 0
    %221 = vmatpush2.bf16.msra.mxu0 0
    %222 = vmatprep.subr.bf16.mxu0 0
    %223 = vmatpush2.bf16.msra.mxu0 0
    %224 = vmatprep.subr.bf16.mxu0 0
    %225 = vmatpush2.bf16.msra.mxu0 0
    %226 = vmatprep.subr.bf16.mxu0 0
    %227 = vmatpush2.bf16.msra.mxu0 0
    %228 = vmatprep.subr.bf16.mxu0 0
    %229 = vmatpush2.bf16.msra.mxu0 0
    %230 = vmatprep.mubr.bf16.mxu0 0
    %231 = vmatmul.mubr.bf16.gmra.mxu0 %v196
    %v232 = vpop.f32.mrf.mxu0
    %v233 = vadd.f32 %v177, %v232
    %v234 = vpop.f32.mrf.mxu0
    %v235 = vpop.f32.mrf.mxu0
    %v236 = vpop.f32.mrf.mxu0
    %237 = vdwg.mxu0
    %v238 = vxor.u32 %v233, 2147483648
    %v239 = vmul.f32 %v238, 1.442695
    %v240 = vpow.pop %v239
    %v241 = vadd.f32 %v240, 1.0
    %v242 = vrcp.pop %v241
    %v243 = vmul.f32 1.0, %v242
    %v244 = vtanh.pop %v70
    %v245 = vsub.f32 %v244, %v70
    %v246 = vmul.f32 %v243, %v245
    %v247 = vadd.f32 %v70, %v246
    %248 = vst [vmem:[#allocation10] sm:$0xff] %v247
    // Predicated region
    $region34: #{tpu_custom_call.1} parent=1 // pred_check
      _
    $region35: #{tpu_custom_call.1} parent=1 // pred_check_branch
      %250 = sbr.rel (0) target = $region37
    $region36: #{tpu_custom_call.1} parent=1 // pred_region
      %s252 = ssub.s32 128, 128
      %253 = vsyncadd [#allocation4], %s252
      %s255 = sshll.u32 [#allocation10], 4
      %s256 = int_to_ptr.vmem [resolvable:$true] %s255
      %258 = dma.vmem_to_hbm [thread:$0]  %s256, 128, %s4, [#allocation4]
    $region37: #{tpu_custom_call.1} parent=1 // pred_fallthru
      _
    // Predicated region
    $region38: #{tpu_custom_call.1} parent=1 // pred_check
      _
    $region39: #{tpu_custom_call.1} parent=1 // pred_check_branch
      %260 = sbr.rel (0) target = $region41
    $region40: #{tpu_custom_call.1} parent=1 // pred_region
      %261 = dma.done [#allocation4], 128
    $region41: #{tpu_custom_call.1} parent=1 // pred_fallthru
      _
    %262 = vsyncpa [#allocation3], 1
    %263 = vsyncpa [#allocation6], 1
    %264 = vsyncpa [#allocation9], 1
    %265 = vsyncpa [#allocation4], 1

</llo_original>
